<compile_context>
chip_gen: v5e
topology: v5e:2x2
jax: 0.10.0
libtpu: 0.0.40
codegen_flags: <defaults>
</compile_context>

<pallas_src>
import jax
import jax.numpy as jnp
from jax.experimental import pallas as pl
from jax.experimental.pallas import tpu as pltpu


def _mlp_kernel(x_ref, w1_ref, b1_ref, w2_ref, b2_ref, w3_ref, b3_ref, o_ref):
    """Fused 3-layer MLP on one (TB, G*O) packed-row tile.

    x_ref : (TB, G*O)  packed observations (G obs rows per feature row)
    w1/w2/w3: block-diagonal weights, b1/b2 tiled biases (resident in VMEM)
    b3_ref: (1,) scalar bias in SMEM
    o_ref : (TB, G)    packed predictions
    """
    x = x_ref[...]
    h1 = jnp.tanh(
        jnp.dot(x, w1_ref[...], preferred_element_type=jnp.float32) + b1_ref[...]
    )
    h2 = jnp.tanh(
        jnp.dot(h1, w2_ref[...], preferred_element_type=jnp.float32) + b2_ref[...]
    )
    out = jnp.dot(h2, w3_ref[...], preferred_element_type=jnp.float32) + b3_ref[0]
    o_ref[...] = out.astype(o_ref.dtype)


def _round_up(x, m):
    return ((x + m - 1) // m) * m


def _choose_pack(P, max_g=8):
    """Largest G in {8,4,2} that divides P exactly (no obs pad => no extra HBM
    copy) while keeping >= 8 packed rows; otherwise fall back to G=1."""
    for g in (8, 4, 2):
        if g <= max_g and P % g == 0 and P // g >= 8:
            return g
    return 1


def _auto_tile_rows(R, GO, GH1, GH2, G, *, max_tile=4096, min_grid_steps=2,
                    vmem_budget_bytes=18 * 1024 * 1024):
    """Largest packed-row tile that amortizes the ~0.35us per-grid-step overhead
    while keeping double-buffered blocks + lane-padded intermediates in budget."""
    if R <= 8:
        return R  # single full-array block (block dims == array dims)

    def lanes(n):  # VMEM lane padding: last dim rounds up to 128
        return _round_up(n, 128)

    per_row = 4 * (                                   # f32 bytes per packed row
        2 * lanes(GO)                                 # double-buffered obs block
        + 2 * lanes(G)                                # double-buffered out block (lane-padded!)
        + lanes(GO) + lanes(GH1) + lanes(GH2) + lanes(G)   # live intermediates
    )
    vmem_cap = max(8, (vmem_budget_bytes // per_row) // 8 * 8)
    # >= min_grid_steps so v7x can shard the 'parallel' batch axis across both
    # TensorCores; 2 steps cost essentially nothing on single-TC v5e/v6e.
    target = max(8, _round_up(-(-R // min_grid_steps), 8))
    tb = min(max_tile, vmem_cap, target, (R // 8) * 8)
    return max(8, tb)


@jax.jit
def pref_mlp_forward(obs, params):
    """Pallas implementation of PrefMLP.forward.

    obs: (P, O) float32 observations.
    params: w1 (O,H1), b1 (1,H1), w2 (H1,H2), b2 (1,H2), w3 (H2,1), b3 (1,1).
    returns: (P, 1) float32 predicted rewards.
    """
    P, O = obs.shape
    H1 = params["w1"].shape[1]
    H2 = params["w2"].shape[1]

    G = _choose_pack(P)
    R = P // G                       # exact: G divides P by construction
    GO, GH1, GH2 = G * O, G * H1, G * H2

    # Free row-major relabel + tiny constant prep (block-diagonal weights).
    obs_p = obs.reshape(R, GO)
    eye = jnp.eye(G, dtype=jnp.float32)
    w1bd = jnp.kron(eye, params["w1"])                    # (G*O , G*H1)
    w2bd = jnp.kron(eye, params["w2"])                    # (G*H1, G*H2)
    w3bd = jnp.kron(eye, params["w3"])                    # (G*H2, G)
    b1bd = jnp.tile(params["b1"].reshape(1, H1), (1, G))  # (1, G*H1)
    b2bd = jnp.tile(params["b2"].reshape(1, H2), (1, G))  # (1, G*H2)
    b3_s = params["b3"].reshape(1)                        # scalar -> SMEM

    tile_r = _auto_tile_rows(R, GO, GH1, GH2, G)
    grid = (pl.cdiv(R, tile_r),)     # ragged last block OK: rows are independent

    in_specs = [
        pl.BlockSpec((tile_r, GO), lambda i: (i, 0)),          # packed obs tile
        # Loop-invariant weights/biases (constant index maps: fetched once and
        # kept resident; Pallas skips re-DMA when the block index is unchanged).
        pl.BlockSpec((GO, GH1), lambda i: (0, 0)),             # blockdiag W1
        pl.BlockSpec((1, GH1), lambda i: (0, 0)),              # tiled b1
        pl.BlockSpec((GH1, GH2), lambda i: (0, 0)),            # blockdiag W2
        pl.BlockSpec((1, GH2), lambda i: (0, 0)),              # tiled b2
        pl.BlockSpec((GH2, G), lambda i: (0, 0)),              # blockdiag w3
        pl.BlockSpec(memory_space=pltpu.MemorySpace.SMEM),     # b3 scalar
    ]
    out_specs = pl.BlockSpec((tile_r, G), lambda i: (i, 0))

    out = pl.pallas_call(
        _mlp_kernel,
        out_shape=jax.ShapeDtypeStruct((R, G), jnp.float32),
        grid_spec=pltpu.PrefetchScalarGridSpec(
            num_scalar_prefetch=0,
            grid=grid,
            in_specs=in_specs,
            out_specs=out_specs,
        ),
        compiler_params=pltpu.CompilerParams(
            dimension_semantics=("parallel",),
            # 32 MiB scoped VMEM: safe on v5e/v6e (128 MiB phys) and equals the
            # v7x default (64 MiB phys); tile sizing above budgets ~20 MiB.
            vmem_limit_bytes=32 * 1024 * 1024,
        ),
    )(obs_p, w1bd, b1bd, w2bd, b2bd, w3bd, b3_s)

    # Row-major relabel back to one prediction per observation row (free).
    return out.reshape(P, 1)


def _xavier_uniform(key, fan_in, fan_out):
    # torch.nn.init.xavier_uniform_: U(-a, a), a = sqrt(6 / (fan_in + fan_out))
    a = (6.0 / (fan_in + fan_out)) ** 0.5
    return jax.random.uniform(
        key, (fan_in, fan_out), dtype=jnp.float32, minval=-a, maxval=a
    )


def init_pref_mlp_params(key, obs_dim, hidden_sizes=(32, 32), output_dim=1):
    h1, h2 = hidden_sizes
    k1, k2, k3 = jax.random.split(key, 3)
    return {
        "w1": _xavier_uniform(k1, obs_dim, h1),
        "b1": jnp.zeros((1, h1), jnp.float32),
        "w2": _xavier_uniform(k2, h1, h2),
        "b2": jnp.zeros((1, h2), jnp.float32),
        "w3": _xavier_uniform(k3, h2, output_dim),
        "b3": jnp.zeros((1, output_dim), jnp.float32),
    }


def pref_mlp_forward_ref(obs, params):
    h1 = jnp.tanh(obs @ params["w1"] + params["b1"])
    h2 = jnp.tanh(h1 @ params["w2"] + params["b2"])
    return h2 @ params["w3"] + params["b3"]


if __name__ == "__main__":
    key = jax.random.PRNGKey(0)
    k_param, k_obs = jax.random.split(key)

    # Small flat observation batch. P=200 exercises the packed path (G=8,
    # 25 packed rows, 2 grid steps with a ragged tail block).
    P, O = 200, 16
    params = init_pref_mlp_params(k_param, obs_dim=O, hidden_sizes=(32, 32))
    obs = jax.random.normal(k_obs, (P, O), dtype=jnp.float32)

    out = jax.block_until_ready(pref_mlp_forward(obs, params))
    ref = pref_mlp_forward_ref(obs, params)
    assert out.shape == (P, 1)
    assert jnp.allclose(out, ref, atol=1e-5, rtol=1e-5), "mismatch vs reference (packed path)"

    # Odd batch exercises the G=1 fallback (no padding, ragged last block).
    P2 = 13
    obs2 = jax.random.normal(jax.random.PRNGKey(1), (P2, O), dtype=jnp.float32)
    out2 = jax.block_until_ready(pref_mlp_forward(obs2, params))
    ref2 = pref_mlp_forward_ref(obs2, params)
    assert out2.shape == (P2, 1)
    assert jnp.allclose(out2, ref2, atol=1e-5, rtol=1e-5), "mismatch vs reference (fallback path)"

    print("KERNEL_OK")
</pallas_src>

<mosaic_0001>
module attributes {stable_mosaic.version = 11 : i64} {
  func.func @_mlp_kernel(%arg0: i32, %arg1: memref<16x128xf32, #tpu.memory_space<vmem>>, %arg2: memref<128x256xf32, #tpu.memory_space<vmem>>, %arg3: memref<1x256xf32, #tpu.memory_space<vmem>>, %arg4: memref<256x256xf32, #tpu.memory_space<vmem>>, %arg5: memref<1x256xf32, #tpu.memory_space<vmem>>, %arg6: memref<256x8xf32, #tpu.memory_space<vmem>>, %arg7: memref<1xf32, #tpu.memory_space<smem>>, %arg8: memref<16x8xf32, #tpu.memory_space<vmem>>) attributes {dimension_semantics = [#tpu.dimension_semantics<parallel>], iteration_bounds = array<i64: 2>, scalar_prefetch = 0 : i64, scratch_operands = 0 : i64, tpu.core_type = #tpu.core_type<tc>, window_params = [{transform_indices = @transform_0, window_bounds = array<i64: 16, 128>}, {pipeline_mode = #tpu.pipeline_mode<synchronous>, transform_indices = @transform_1, window_bounds = array<i64: 128, 256>}, {pipeline_mode = #tpu.pipeline_mode<synchronous>, transform_indices = @transform_2, window_bounds = array<i64: 1, 256>}, {pipeline_mode = #tpu.pipeline_mode<synchronous>, transform_indices = @transform_3, window_bounds = array<i64: 256, 256>}, {pipeline_mode = #tpu.pipeline_mode<synchronous>, transform_indices = @transform_4, window_bounds = array<i64: 1, 256>}, {pipeline_mode = #tpu.pipeline_mode<synchronous>, transform_indices = @transform_5, window_bounds = array<i64: 256, 8>}, {transform_indices = @transform_6, window_bounds = array<i64: 1>}, {transform_indices = @transform_7, window_bounds = array<i64: 16, 8>}]} {
    %c0 = arith.constant 0 : index
    %c0_0 = arith.constant 0 : index
    %0 = vector.load %arg1[%c0, %c0_0] : memref<16x128xf32, #tpu.memory_space<vmem>>, vector<16x128xf32>
    %c0_1 = arith.constant 0 : index
    %c0_2 = arith.constant 0 : index
    %1 = vector.load %arg2[%c0_1, %c0_2] : memref<128x256xf32, #tpu.memory_space<vmem>>, vector<128x256xf32>
    %cst = arith.constant dense<0.000000e+00> : vector<16x256xf32>
    %2 = tpu.matmul %0, %1, %cst {dimension_numbers = #tpu.dot_dimension_numbers<[1], [0], [0], [1], [0, 0, 1, 1], [], []>} : vector<16x128xf32>, vector<128x256xf32>, vector<16x256xf32> -> vector<16x256xf32>
    %c0_3 = arith.constant 0 : index
    %c0_4 = arith.constant 0 : index
    %3 = vector.load %arg3[%c0_3, %c0_4] : memref<1x256xf32, #tpu.memory_space<vmem>>, vector<1x256xf32>
    %4 = vector.broadcast %3 : vector<1x256xf32> to vector<16x256xf32>
    %5 = arith.addf %2, %4 : vector<16x256xf32>
    %6 = math.tanh %5 : vector<16x256xf32>
    %c0_5 = arith.constant 0 : index
    %c0_6 = arith.constant 0 : index
    %7 = vector.load %arg4[%c0_5, %c0_6] : memref<256x256xf32, #tpu.memory_space<vmem>>, vector<256x256xf32>
    %cst_7 = arith.constant dense<0.000000e+00> : vector<16x256xf32>
    %8 = tpu.matmul %6, %7, %cst_7 {dimension_numbers = #tpu.dot_dimension_numbers<[1], [0], [0], [1], [0, 0, 1, 1], [], []>} : vector<16x256xf32>, vector<256x256xf32>, vector<16x256xf32> -> vector<16x256xf32>
    %c0_8 = arith.constant 0 : index
    %c0_9 = arith.constant 0 : index
    %9 = vector.load %arg5[%c0_8, %c0_9] : memref<1x256xf32, #tpu.memory_space<vmem>>, vector<1x256xf32>
    %10 = vector.broadcast %9 : vector<1x256xf32> to vector<16x256xf32>
    %11 = arith.addf %8, %10 : vector<16x256xf32>
    %12 = math.tanh %11 : vector<16x256xf32>
    %c0_10 = arith.constant 0 : index
    %c0_11 = arith.constant 0 : index
    %13 = vector.load %arg6[%c0_10, %c0_11] : memref<256x8xf32, #tpu.memory_space<vmem>>, vector<256x8xf32>
    %cst_12 = arith.constant dense<0.000000e+00> : vector<16x8xf32>
    %14 = tpu.matmul %12, %13, %cst_12 {dimension_numbers = #tpu.dot_dimension_numbers<[1], [0], [0], [1], [0, 0, 1, 1], [], []>} : vector<16x256xf32>, vector<256x8xf32>, vector<16x8xf32> -> vector<16x8xf32>
    %c0_13 = arith.constant 0 : index
    %15 = memref.load %arg7[%c0_13] : memref<1xf32, #tpu.memory_space<smem>>
    %16 = vector.broadcast %15 : f32 to vector<16x8xf32>
    %17 = arith.addf %14, %16 : vector<16x8xf32>
    %c0_14 = arith.constant 0 : index
    %c0_15 = arith.constant 0 : index
    %18 = vector.load %arg8[%c0_14, %c0_15] : memref<16x8xf32, #tpu.memory_space<vmem>>, vector<16x8xf32>
    tpu.vector_store %arg8[%c0_14, %c0_15], %17 {strides = array<i32>} : memref<16x8xf32, #tpu.memory_space<vmem>>, vector<16x8xf32>,
    return
  }
  func.func @transform_0(%arg0: i32) -> (i32, i32) {
    %c0_i32 = arith.constant 0 : i32
    %c0_i32_0 = arith.constant 0 : i32
    return %arg0, %c0_i32 : i32, i32
  }
  func.func @transform_1(%arg0: i32) -> (i32, i32) {
    %c0_i32 = arith.constant 0 : i32
    %c0_i32_0 = arith.constant 0 : i32
    %c0_i32_1 = arith.constant 0 : i32
    return %c0_i32, %c0_i32_0 : i32, i32
  }
  func.func @transform_2(%arg0: i32) -> (i32, i32) {
    %c0_i32 = arith.constant 0 : i32
    %c0_i32_0 = arith.constant 0 : i32
    %c0_i32_1 = arith.constant 0 : i32
    return %c0_i32, %c0_i32_0 : i32, i32
  }
  func.func @transform_3(%arg0: i32) -> (i32, i32) {
    %c0_i32 = arith.constant 0 : i32
    %c0_i32_0 = arith.constant 0 : i32
    %c0_i32_1 = arith.constant 0 : i32
    return %c0_i32, %c0_i32_0 : i32, i32
  }
  func.func @transform_4(%arg0: i32) -> (i32, i32) {
    %c0_i32 = arith.constant 0 : i32
    %c0_i32_0 = arith.constant 0 : i32
    %c0_i32_1 = arith.constant 0 : i32
    return %c0_i32, %c0_i32_0 : i32, i32
  }
  func.func @transform_5(%arg0: i32) -> (i32, i32) {
    %c0_i32 = arith.constant 0 : i32
    %c0_i32_0 = arith.constant 0 : i32
    %c0_i32_1 = arith.constant 0 : i32
    return %c0_i32, %c0_i32_0 : i32, i32
  }
  func.func @transform_6(%arg0: i32) -> i32 {
    %c0_i32 = arith.constant 0 : i32
    %c0_i32_0 = arith.constant 0 : i32
    return %c0_i32 : i32
  }
  func.func @transform_7(%arg0: i32) -> (i32, i32) {
    %c0_i32 = arith.constant 0 : i32
    %c0_i32_0 = arith.constant 0 : i32
    return %arg0, %c0_i32 : i32, i32
  }
}

</mosaic_0001>

<llo_original>
// kernel: pref_mlp_forward.1
$region0: #{pref_mlp_forward.1}
  #allocation0 [shape = 'u32[]', space=smem, size = 0x4, offset = 0x4, fixed_abs, tag = 'smem constant byte address 0x4 - core index']
  #allocation1 [shape = 'u32[72,128]{1,0:T(1,128)}', space=vmem, size = 0x9000, scoped, tag = 'internal scratch']
  #allocation2 [shape = 'f32[1]{0:T(128)S(6)}', space=smem, size = 0x200, scoped, tag = 'scoped memory for pref_mlp_forward.1']
  %s0 = inlined_call_operand.vmem [shape: f32[25,128], index: 0, kind: input, shape index: {}]
  %s1 = inlined_call_operand.vmem [shape: f32[128,256], index: 1, kind: input, shape index: {}]
  %s2 = inlined_call_operand.vmem [shape: f32[1,256], index: 2, kind: input, shape index: {}]
  %s3 = inlined_call_operand.vmem [shape: f32[256,256], index: 3, kind: input, shape index: {}]
  %s4 = inlined_call_operand.vmem [shape: f32[1,256], index: 4, kind: input, shape index: {}]
  %s5 = inlined_call_operand.vmem [shape: f32[256,8], index: 5, kind: input, shape index: {}]
  %s6 = inlined_call_operand.<no memory space> [shape: f32[1], index: 6, kind: input, shape index: {}]
  %s7 = inlined_call_operand.vmem [shape: f32[25,8], index: 7, kind: output, shape index: {}]
  %s8 = sld [smem:[#allocation0]]
  $region61: #{pref_mlp_forward.1} parent=0
    _
  %s10 = ssub.s32 1, %s8
  %s11 = scalar_select 0, %s10, %s8
  %12 = sst [smem:[#allocation2]] %s6
  loop: start=0, step=1, limit=4
  $region2: #{pref_mlp_forward.1} parent=0 // loop_pre_header
    _
  $region3: #{pref_mlp_forward.1} parent=0 // loop_header
    %s14 = sphi 0, %s18
    %p15 = scmp.ge.s32.totalorder %s14, 4
    %s24 = sphi 0, %s26
    %s27 = sphi 0, %s24
    %s28 = sphi 0, %s27
    %s44 = sphi 0, %s28
    %s48 = sphi 0, %s48
    %s50 = sphi 0, %s48
    %s51 = sphi 0, %s50
    %s65 = sphi 0, %s51
    %s69 = sphi 0, %s69
    %s71 = sphi 0, %s69
    %s72 = sphi 0, %s71
    %s86 = sphi 0, %s72
    %s90 = sphi 0, %s90
    %s92 = sphi 0, %s90
    %s93 = sphi 0, %s92
    %s107 = sphi 0, %s93
    %s111 = sphi 0, %s111
    %s113 = sphi 0, %s111
    %s114 = sphi 0, %s113
    %s128 = sphi 0, %s114
    %s132 = sphi 0, %s132
    %s134 = sphi 0, %s132
    %s135 = sphi 0, %s134
    %s149 = sphi 0, %s135
    %s153 = sphi 0, %s153
    %s155 = sphi 0, %s153
    %s156 = sphi 0, %s155
    %s170 = sphi 0, %s156
    %s176 = sphi 0, %s178
    %s179 = sphi 0, %s176
    %s180 = sphi 0, %s179
    %s196 = sphi 0, %s180
  $region4: #{pref_mlp_forward.1} parent=0 // loop_header_branch
    %17 = sbr.rel (%p15) target = $region8
  $region5: #{pref_mlp_forward.1} parent=0 // loop_body
    %s19 = ssub.s32 %s14, 1
    %s20 = ssub.s32 %s14, 2
    %s21 = sadd.s32 %s14, 1
    %s22 = ssub.s32 %s14, %s21
    %p23 = scmp.eq.s32.totalorder %s22, 0
    %s25 = sadd.s32 %s24, 1
    %s26 = scalar_select %p23, %s24, %s25
    %p29 = pneg %p23
    %p30 = scmp.eq.s32.totalorder %s14, 1
    %p31 = por %p29, %p30
    %p32 = scmp.ne.s32.totalorder %s24, %s27
    %p33 = scmp.eq.s32.totalorder %s14, 0
    %p34 = por %p32, %p33
    %p35 = scmp.ne.s32.totalorder %s24, %s27
    %p36 = scmp.eq.s32.totalorder %s19, 1
    %p37 = por %p35, %p36
    %p38 = scmp.ne.s32.totalorder %s27, %s28
    %p39 = scmp.eq.s32.totalorder %s19, 0
    %p40 = por %p38, %p39
    %p41 = scmp.ne.s32.totalorder %s27, %s28
    %p42 = scmp.eq.s32.totalorder %s20, 1
    %p43 = por %p41, %p42
    %p45 = scmp.ne.s32.totalorder %s28, %s44
    %p46 = scmp.eq.s32.totalorder %s20, 0
    %p47 = por %p45, %p46
    %s49 = sadd.s32 %s48, 1
    %p52 = scmp.eq.s32.totalorder %s14, 1
    %p53 = scmp.ne.s32.totalorder %s48, %s50
    %p54 = scmp.eq.s32.totalorder %s14, 0
    %p55 = por %p53, %p54
    %p56 = scmp.ne.s32.totalorder %s48, %s50
    %p57 = scmp.eq.s32.totalorder %s19, 1
    %p58 = por %p56, %p57
    %p59 = scmp.ne.s32.totalorder %s50, %s51
    %p60 = scmp.eq.s32.totalorder %s19, 0
    %p61 = por %p59, %p60
    %p62 = scmp.ne.s32.totalorder %s50, %s51
    %p63 = scmp.eq.s32.totalorder %s20, 1
    %p64 = por %p62, %p63
    %p66 = scmp.ne.s32.totalorder %s51, %s65
    %p67 = scmp.eq.s32.totalorder %s20, 0
    %p68 = por %p66, %p67
    %s70 = sadd.s32 %s69, 1
    %p73 = scmp.eq.s32.totalorder %s14, 1
    %p74 = scmp.ne.s32.totalorder %s69, %s71
    %p75 = scmp.eq.s32.totalorder %s14, 0
    %p76 = por %p74, %p75
    %p77 = scmp.ne.s32.totalorder %s69, %s71
    %p78 = scmp.eq.s32.totalorder %s19, 1
    %p79 = por %p77, %p78
    %p80 = scmp.ne.s32.totalorder %s71, %s72
    %p81 = scmp.eq.s32.totalorder %s19, 0
    %p82 = por %p80, %p81
    %p83 = scmp.ne.s32.totalorder %s71, %s72
    %p84 = scmp.eq.s32.totalorder %s20, 1
    %p85 = por %p83, %p84
    %p87 = scmp.ne.s32.totalorder %s72, %s86
    %p88 = scmp.eq.s32.totalorder %s20, 0
    %p89 = por %p87, %p88
    %s91 = sadd.s32 %s90, 1
    %p94 = scmp.eq.s32.totalorder %s14, 1
    %p95 = scmp.ne.s32.totalorder %s90, %s92
    %p96 = scmp.eq.s32.totalorder %s14, 0
    %p97 = por %p95, %p96
    %p98 = scmp.ne.s32.totalorder %s90, %s92
    %p99 = scmp.eq.s32.totalorder %s19, 1
    %p100 = por %p98, %p99
    %p101 = scmp.ne.s32.totalorder %s92, %s93
    %p102 = scmp.eq.s32.totalorder %s19, 0
    %p103 = por %p101, %p102
    %p104 = scmp.ne.s32.totalorder %s92, %s93
    %p105 = scmp.eq.s32.totalorder %s20, 1
    %p106 = por %p104, %p105
    %p108 = scmp.ne.s32.totalorder %s93, %s107
    %p109 = scmp.eq.s32.totalorder %s20, 0
    %p110 = por %p108, %p109
    %s112 = sadd.s32 %s111, 1
    %p115 = scmp.eq.s32.totalorder %s14, 1
    %p116 = scmp.ne.s32.totalorder %s111, %s113
    %p117 = scmp.eq.s32.totalorder %s14, 0
    %p118 = por %p116, %p117
    %p119 = scmp.ne.s32.totalorder %s111, %s113
    %p120 = scmp.eq.s32.totalorder %s19, 1
    %p121 = por %p119, %p120
    %p122 = scmp.ne.s32.totalorder %s113, %s114
    %p123 = scmp.eq.s32.totalorder %s19, 0
    %p124 = por %p122, %p123
    %p125 = scmp.ne.s32.totalorder %s113, %s114
    %p126 = scmp.eq.s32.totalorder %s20, 1
    %p127 = por %p125, %p126
    %p129 = scmp.ne.s32.totalorder %s114, %s128
    %p130 = scmp.eq.s32.totalorder %s20, 0
    %p131 = por %p129, %p130
    %s133 = sadd.s32 %s132, 1
    %p136 = scmp.eq.s32.totalorder %s14, 1
    %p137 = scmp.ne.s32.totalorder %s132, %s134
    %p138 = scmp.eq.s32.totalorder %s14, 0
    %p139 = por %p137, %p138
    %p140 = scmp.ne.s32.totalorder %s132, %s134
    %p141 = scmp.eq.s32.totalorder %s19, 1
    %p142 = por %p140, %p141
    %p143 = scmp.ne.s32.totalorder %s134, %s135
    %p144 = scmp.eq.s32.totalorder %s19, 0
    %p145 = por %p143, %p144
    %p146 = scmp.ne.s32.totalorder %s134, %s135
    %p147 = scmp.eq.s32.totalorder %s20, 1
    %p148 = por %p146, %p147
    %p150 = scmp.ne.s32.totalorder %s135, %s149
    %p151 = scmp.eq.s32.totalorder %s20, 0
    %p152 = por %p150, %p151
    %s154 = sadd.s32 %s153, 1
    %p157 = scmp.eq.s32.totalorder %s14, 1
    %p158 = scmp.ne.s32.totalorder %s153, %s155
    %p159 = scmp.eq.s32.totalorder %s14, 0
    %p160 = por %p158, %p159
    %p161 = scmp.ne.s32.totalorder %s153, %s155
    %p162 = scmp.eq.s32.totalorder %s19, 1
    %p163 = por %p161, %p162
    %p164 = scmp.ne.s32.totalorder %s155, %s156
    %p165 = scmp.eq.s32.totalorder %s19, 0
    %p166 = por %p164, %p165
    %p167 = scmp.ne.s32.totalorder %s155, %s156
    %p168 = scmp.eq.s32.totalorder %s20, 1
    %p169 = por %p167, %p168
    %p171 = scmp.ne.s32.totalorder %s156, %s170
    %p172 = scmp.eq.s32.totalorder %s20, 0
    %p173 = por %p171, %p172
    %s174 = ssub.s32 %s14, %s21
    %p175 = scmp.eq.s32.totalorder %s174, 0
    %s177 = sadd.s32 %s176, 1
    %s178 = scalar_select %p175, %s176, %s177
    %p181 = pneg %p175
    %p182 = scmp.eq.s32.totalorder %s14, 1
    %p183 = por %p181, %p182
    %p184 = scmp.ne.s32.totalorder %s176, %s179
    %p185 = scmp.eq.s32.totalorder %s14, 0
    %p186 = por %p184, %p185
    %p187 = scmp.ne.s32.totalorder %s176, %s179
    %p188 = scmp.eq.s32.totalorder %s19, 1
    %p189 = por %p187, %p188
    %p190 = scmp.ne.s32.totalorder %s179, %s180
    %p191 = scmp.eq.s32.totalorder %s19, 0
    %p192 = por %p190, %p191
    %p193 = scmp.ne.s32.totalorder %s179, %s180
    %p194 = scmp.eq.s32.totalorder %s20, 1
    %p195 = por %p193, %p194
    %p197 = scmp.ne.s32.totalorder %s180, %s196
    %p198 = scmp.eq.s32.totalorder %s20, 0
    %p199 = por %p197, %p198
    %p200 = scmp.le.s32.totalorder 1, %s14
    %p201 = scmp.lt.s32.totalorder %s14, 3
    %p202 = pnand %p200, %p201
    %p203 = pneg %p202
    // Predicated region
    $region9: #{pref_mlp_forward.1} parent=5 // pred_check
      _
    $region10: #{pref_mlp_forward.1} parent=5 // pred_check_branch
      %205 = sbr.rel (%p202) target = $region12
    $region11: #{pref_mlp_forward.1} parent=5 // pred_region
      %s206 = ssub.s32 %s14, 1
      // Predicated region
      $region13: #{pref_mlp_forward.1} parent=11 // pred_check
        %p207 = pneg %p61
      $region14: #{pref_mlp_forward.1} parent=11 // pred_check_branch
        %209 = sbr.rel (%p207) target = $region16
      $region15: #{pref_mlp_forward.1} parent=11 // pred_region
        _
      $region16: #{pref_mlp_forward.1} parent=11 // pred_fallthru
        _
      // Predicated region
      $region17: #{pref_mlp_forward.1} parent=11 // pred_check
        %p210 = pneg %p82
      $region18: #{pref_mlp_forward.1} parent=11 // pred_check_branch
        %212 = sbr.rel (%p210) target = $region20
      $region19: #{pref_mlp_forward.1} parent=11 // pred_region
        _
      $region20: #{pref_mlp_forward.1} parent=11 // pred_fallthru
        _
      // Predicated region
      $region21: #{pref_mlp_forward.1} parent=11 // pred_check
        %p213 = pneg %p103
      $region22: #{pref_mlp_forward.1} parent=11 // pred_check_branch
        %215 = sbr.rel (%p213) target = $region24
      $region23: #{pref_mlp_forward.1} parent=11 // pred_region
        _
      $region24: #{pref_mlp_forward.1} parent=11 // pred_fallthru
        _
      // Predicated region
      $region25: #{pref_mlp_forward.1} parent=11 // pred_check
        %p216 = pneg %p124
      $region26: #{pref_mlp_forward.1} parent=11 // pred_check_branch
        %218 = sbr.rel (%p216) target = $region28
      $region27: #{pref_mlp_forward.1} parent=11 // pred_region
        _
      $region28: #{pref_mlp_forward.1} parent=11 // pred_fallthru
        _
      // Predicated region
      $region29: #{pref_mlp_forward.1} parent=11 // pred_check
        %p219 = pneg %p145
      $region30: #{pref_mlp_forward.1} parent=11 // pred_check_branch
        %221 = sbr.rel (%p219) target = $region32
      $region31: #{pref_mlp_forward.1} parent=11 // pred_region
        _
      $region32: #{pref_mlp_forward.1} parent=11 // pred_fallthru
        _
      // Predicated region
      $region33: #{pref_mlp_forward.1} parent=11 // pred_check
        %p222 = pneg %p166
      $region34: #{pref_mlp_forward.1} parent=11 // pred_check_branch
        %224 = sbr.rel (%p222) target = $region36
      $region35: #{pref_mlp_forward.1} parent=11 // pred_region
        _
      $region36: #{pref_mlp_forward.1} parent=11 // pred_fallthru
        _
    $region12: #{pref_mlp_forward.1} parent=5 // pred_fallthru
      _
    %p225 = scmp.lt.s32.totalorder %s14, 2
    // Predicated region
    $region37: #{pref_mlp_forward.1} parent=5 // pred_check
      %p226 = pneg %p225
    $region38: #{pref_mlp_forward.1} parent=5 // pred_check_branch
      %228 = sbr.rel (%p226) target = $region40
    $region39: #{pref_mlp_forward.1} parent=5 // pred_region
      // Predicated region
      $region41: #{pref_mlp_forward.1} parent=39 // pred_check
        %p229 = pneg %p34
      $region42: #{pref_mlp_forward.1} parent=39 // pred_check_branch
        %231 = sbr.rel (%p229) target = $region44
      $region43: #{pref_mlp_forward.1} parent=39 // pred_region
        %s232 = smul.u32 2, %s14
        %p233 = scmp.lt.s32.totalorder %s232, 3
        %s234 = scalar_select %p233, %s232, 3
        %s235 = smul.addr %s234, 8
        %s236 = scalar_lea.vmem %s0, %s235
        %s237 = smul.u32 2, %s14
      $region44: #{pref_mlp_forward.1} parent=39 // pred_fallthru
        _
    $region40: #{pref_mlp_forward.1} parent=5 // pred_fallthru
      _
    %p238 = scmp.le.s32.totalorder 1, %s14
    %p239 = scmp.lt.s32.totalorder %s14, 3
    %p240 = pnand %p238, %p239
    %p241 = pneg %p240
    // Predicated region
    $region45: #{pref_mlp_forward.1} parent=5 // pred_check
      _
    $region46: #{pref_mlp_forward.1} parent=5 // pred_check_branch
      %243 = sbr.rel (%p240) target = $region48
    $region47: #{pref_mlp_forward.1} parent=5 // pred_region
      %s244 = ssub.s32 %s14, 1
      %s245 = smul.u32 2, %s19
      %p246 = scmp.lt.s32.totalorder %s245, 3
      %s247 = scalar_select %p246, %s245, 3
      %s248 = smul.addr %s247, 8
      %s249 = scalar_lea.vmem %s0, %s248
      %p250 = pneg %p40
      %p251 = pneg %p37
      %p252 = pneg %p61
      %p253 = pneg %p58
      %p254 = pneg %p82
      %p255 = pneg %p79
      %p256 = pneg %p103
      %p257 = pneg %p100
      %p258 = pneg %p124
      %p259 = pneg %p121
      %p260 = pneg %p145
      %p261 = pneg %p142
      %p262 = pneg %p166
      %p263 = pneg %p163
      %p264 = pneg %p192
      %p265 = pneg %p189
      %s266 = smul.u32 2, %s19
      %p267 = scmp.lt.s32.totalorder %s266, 3
      %s268 = scalar_select %p267, %s266, 3
      %s269 = smul.addr %s268, 8
      %s270 = scalar_lea.vmem %s7, %s269
      %s271 = smul.u32 2, %s19
      %p272 = scmp.lt.s32.totalorder %s271, 3
      %s273 = scalar_select %p272, %s271, 3
      %s274 = smul.addr %s273, 8
      %s275 = scalar_lea.vmem %s0, %s274
      %s276 = smul.u32 2, %s19
      %s277 = smul.u32 2, %s19
      %p278 = scmp.lt.s32.totalorder %s277, 3
      %s279 = scalar_select %p278, %s277, 3
      %s280 = smul.addr %s279, 8
      %s281 = scalar_lea.vmem %s7, %s280
      %s282 = smul.u32 2, %s19
      %v283 = vld [vmem:[%s275] sm:$0xff]
      %v284 = vld [vmem:[%s275 + $0x8] sm:$0xff]
      %v285 = vld [vmem:[%s1] sm:$0xff]
      %v286 = vld [vmem:[%s1 + $0x8] sm:$0xff]
      %v287 = vld [vmem:[%s1 + $0x10] sm:$0xff]
      %v288 = vld [vmem:[%s1 + $0x18] sm:$0xff]
      %v289 = vld [vmem:[%s1 + $0x20] sm:$0xff]
      %v290 = vld [vmem:[%s1 + $0x28] sm:$0xff]
      %v291 = vld [vmem:[%s1 + $0x30] sm:$0xff]
      %v292 = vld [vmem:[%s1 + $0x38] sm:$0xff]
      %v293 = vld [vmem:[%s1 + $0x40] sm:$0xff]
      %v294 = vld [vmem:[%s1 + $0x48] sm:$0xff]
      %v295 = vld [vmem:[%s1 + $0x50] sm:$0xff]
      %v296 = vld [vmem:[%s1 + $0x58] sm:$0xff]
      %v297 = vld [vmem:[%s1 + $0x60] sm:$0xff]
      %v298 = vld [vmem:[%s1 + $0x68] sm:$0xff]
      %v299 = vld [vmem:[%s1 + $0x70] sm:$0xff]
      %v300 = vld [vmem:[%s1 + $0x78] sm:$0xff]
      %v301 = vld [vmem:[%s1 + $0x80] sm:$0xff]
      %v302 = vld [vmem:[%s1 + $0x88] sm:$0xff]
      %v303 = vld [vmem:[%s1 + $0x90] sm:$0xff]
      %v304 = vld [vmem:[%s1 + $0x98] sm:$0xff]
      %v305 = vld [vmem:[%s1 + $0xa0] sm:$0xff]
      %v306 = vld [vmem:[%s1 + $0xa8] sm:$0xff]
      %v307 = vld [vmem:[%s1 + $0xb0] sm:$0xff]
      %v308 = vld [vmem:[%s1 + $0xb8] sm:$0xff]
      %v309 = vld [vmem:[%s1 + $0xc0] sm:$0xff]
      %v310 = vld [vmem:[%s1 + $0xc8] sm:$0xff]
      %v311 = vld [vmem:[%s1 + $0xd0] sm:$0xff]
      %v312 = vld [vmem:[%s1 + $0xd8] sm:$0xff]
      %v313 = vld [vmem:[%s1 + $0xe0] sm:$0xff]
      %v314 = vld [vmem:[%s1 + $0xe8] sm:$0xff]
      %v315 = vld [vmem:[%s1 + $0xf0] sm:$0xff]
      %v316 = vld [vmem:[%s1 + $0xf8] sm:$0xff]
      %v317 = vld [vmem:[%s2] sm:$0x3]
      %v319 = vperm.slane %v317, 0
      %v320 = vperm.slane %v317, 1
      %323 = vmatpush.msra.mxu0 %v315
      %324 = vmatpush.msra.mxu0 %v313
      %325 = vmatpush.msra.mxu0 %v311
      %326 = vmatpush.msra.mxu0 %v309
      %327 = vmatpush.msra.mxu0 %v307
      %328 = vmatpush.msra.mxu0 %v305
      %329 = vmatpush.msra.mxu0 %v303
      %330 = vmatpush.msra.mxu0 %v301
      %331 = vmatpush.msra.mxu0 %v299
      %332 = vmatpush.msra.mxu0 %v297
      %333 = vmatpush.msra.mxu0 %v295
      %334 = vmatpush.msra.mxu0 %v293
      %335 = vmatpush.msra.mxu0 %v291
      %336 = vmatpush.msra.mxu0 %v289
      %337 = vmatpush.msra.mxu0 %v287
      %338 = vmatpush.msra.mxu0 %v285
      %339 = vmatmul.f32.gmra.mxu0 %v283
      %v340 = vpop.f32.mrf.mxu0
      %v341 = vadd.f32 %v319, %v340
      %342 = vmatmul.f32.gmra.mxu0 %v284
      %v343 = vpop.f32.mrf.mxu0
      %v344 = vadd.f32 %v319, %v343
      %345 = vdwg.mxu0
      %346 = vmatpush.msra.mxu0 %v316
      %347 = vmatpush.msra.mxu0 %v314
      %348 = vmatpush.msra.mxu0 %v312
      %349 = vmatpush.msra.mxu0 %v310
      %350 = vmatpush.msra.mxu0 %v308
      %351 = vmatpush.msra.mxu0 %v306
      %352 = vmatpush.msra.mxu0 %v304
      %353 = vmatpush.msra.mxu0 %v302
      %354 = vmatpush.msra.mxu0 %v300
      %355 = vmatpush.msra.mxu0 %v298
      %356 = vmatpush.msra.mxu0 %v296
      %357 = vmatpush.msra.mxu0 %v294
      %358 = vmatpush.msra.mxu0 %v292
      %359 = vmatpush.msra.mxu0 %v290
      %360 = vmatpush.msra.mxu0 %v288
      %361 = vmatpush.msra.mxu0 %v286
      %362 = vmatmul.f32.gmra.mxu0 %v283
      %v363 = vpop.f32.mrf.mxu0
      %v364 = vadd.f32 %v320, %v363
      %365 = vmatmul.f32.gmra.mxu0 %v284
      %v366 = vpop.f32.mrf.mxu0
      %v367 = vadd.f32 %v320, %v366
      %368 = vdwg.mxu0
      %v369 = vtanh.pop %v341
      %v370 = vtanh.pop %v364
      %v371 = vtanh.pop %v344
      %v372 = vtanh.pop %v367
      %v373 = vld [vmem:[%s3] sm:$0xff]
      %v374 = vld [vmem:[%s3 + $0x8] sm:$0xff]
      %v375 = vld [vmem:[%s3 + $0x10] sm:$0xff]
      %v376 = vld [vmem:[%s3 + $0x18] sm:$0xff]
      %v377 = vld [vmem:[%s3 + $0x20] sm:$0xff]
      %v378 = vld [vmem:[%s3 + $0x28] sm:$0xff]
      %v379 = vld [vmem:[%s3 + $0x30] sm:$0xff]
      %v380 = vld [vmem:[%s3 + $0x38] sm:$0xff]
      %v381 = vld [vmem:[%s3 + $0x40] sm:$0xff]
      %v382 = vld [vmem:[%s3 + $0x48] sm:$0xff]
      %v383 = vld [vmem:[%s3 + $0x50] sm:$0xff]
      %v384 = vld [vmem:[%s3 + $0x58] sm:$0xff]
      %v385 = vld [vmem:[%s3 + $0x60] sm:$0xff]
      %v386 = vld [vmem:[%s3 + $0x68] sm:$0xff]
      %v387 = vld [vmem:[%s3 + $0x70] sm:$0xff]
      %v388 = vld [vmem:[%s3 + $0x78] sm:$0xff]
      %v389 = vld [vmem:[%s3 + $0x80] sm:$0xff]
      %v390 = vld [vmem:[%s3 + $0x88] sm:$0xff]
      %v391 = vld [vmem:[%s3 + $0x90] sm:$0xff]
      %v392 = vld [vmem:[%s3 + $0x98] sm:$0xff]
      %v393 = vld [vmem:[%s3 + $0xa0] sm:$0xff]
      %v394 = vld [vmem:[%s3 + $0xa8] sm:$0xff]
      %v395 = vld [vmem:[%s3 + $0xb0] sm:$0xff]
      %v396 = vld [vmem:[%s3 + $0xb8] sm:$0xff]
      %v397 = vld [vmem:[%s3 + $0xc0] sm:$0xff]
      %v398 = vld [vmem:[%s3 + $0xc8] sm:$0xff]
      %v399 = vld [vmem:[%s3 + $0xd0] sm:$0xff]
      %v400 = vld [vmem:[%s3 + $0xd8] sm:$0xff]
      %v401 = vld [vmem:[%s3 + $0xe0] sm:$0xff]
      %v402 = vld [vmem:[%s3 + $0xe8] sm:$0xff]
      %v403 = vld [vmem:[%s3 + $0xf0] sm:$0xff]
      %v404 = vld [vmem:[%s3 + $0xf8] sm:$0xff]
      %v405 = vld [vmem:[%s3 + $0x100] sm:$0xff]
      %v406 = vld [vmem:[%s3 + $0x108] sm:$0xff]
      %v407 = vld [vmem:[%s3 + $0x110] sm:$0xff]
      %v408 = vld [vmem:[%s3 + $0x118] sm:$0xff]
      %v409 = vld [vmem:[%s3 + $0x120] sm:$0xff]
      %v410 = vld [vmem:[%s3 + $0x128] sm:$0xff]
      %v411 = vld [vmem:[%s3 + $0x130] sm:$0xff]
      %v412 = vld [vmem:[%s3 + $0x138] sm:$0xff]
      %v413 = vld [vmem:[%s3 + $0x140] sm:$0xff]
      %v414 = vld [vmem:[%s3 + $0x148] sm:$0xff]
      %v415 = vld [vmem:[%s3 + $0x150] sm:$0xff]
      %v416 = vld [vmem:[%s3 + $0x158] sm:$0xff]
      %v417 = vld [vmem:[%s3 + $0x160] sm:$0xff]
      %v418 = vld [vmem:[%s3 + $0x168] sm:$0xff]
      %v419 = vld [vmem:[%s3 + $0x170] sm:$0xff]
      %v420 = vld [vmem:[%s3 + $0x178] sm:$0xff]
      %v421 = vld [vmem:[%s3 + $0x180] sm:$0xff]
      %v422 = vld [vmem:[%s3 + $0x188] sm:$0xff]
      %v423 = vld [vmem:[%s3 + $0x190] sm:$0xff]
      %v424 = vld [vmem:[%s3 + $0x198] sm:$0xff]
      %v425 = vld [vmem:[%s3 + $0x1a0] sm:$0xff]
      %v426 = vld [vmem:[%s3 + $0x1a8] sm:$0xff]
      %v427 = vld [vmem:[%s3 + $0x1b0] sm:$0xff]
      %v428 = vld [vmem:[%s3 + $0x1b8] sm:$0xff]
      %v429 = vld [vmem:[%s3 + $0x1c0] sm:$0xff]
      %v430 = vld [vmem:[%s3 + $0x1c8] sm:$0xff]
      %v431 = vld [vmem:[%s3 + $0x1d0] sm:$0xff]
      %v432 = vld [vmem:[%s3 + $0x1d8] sm:$0xff]
      %v433 = vld [vmem:[%s3 + $0x1e0] sm:$0xff]
      %v434 = vld [vmem:[%s3 + $0x1e8] sm:$0xff]
      %v435 = vld [vmem:[%s3 + $0x1f0] sm:$0xff]
      %v436 = vld [vmem:[%s3 + $0x1f8] sm:$0xff]
      %v437 = vld [vmem:[%s4] sm:$0x3]
      %v439 = vperm.slane %v437, 0
      %v440 = vperm.slane %v437, 1
      %443 = vmatpush.msra.mxu0 %v403
      %444 = vmatpush.msra.mxu0 %v401
      %445 = vmatpush.msra.mxu0 %v399
      %446 = vmatpush.msra.mxu0 %v397
      %447 = vmatpush.msra.mxu0 %v395
      %448 = vmatpush.msra.mxu0 %v393
      %449 = vmatpush.msra.mxu0 %v391
      %450 = vmatpush.msra.mxu0 %v389
      %451 = vmatpush.msra.mxu0 %v387
      %452 = vmatpush.msra.mxu0 %v385
      %453 = vmatpush.msra.mxu0 %v383
      %454 = vmatpush.msra.mxu0 %v381
      %455 = vmatpush.msra.mxu0 %v379
      %456 = vmatpush.msra.mxu0 %v377
      %457 = vmatpush.msra.mxu0 %v375
      %458 = vmatpush.msra.mxu0 %v373
      %459 = vmatmul.f32.gmra.mxu0 %v369
      %v460 = vpop.f32.mrf.mxu0
      %v461 = vadd.f32 %v439, %v460
      %462 = vmatmul.f32.gmra.mxu0 %v371
      %v463 = vpop.f32.mrf.mxu0
      %v464 = vadd.f32 %v439, %v463
      %465 = vdwg.mxu0
      %466 = vmatpush.msra.mxu0 %v435
      %467 = vmatpush.msra.mxu0 %v433
      %468 = vmatpush.msra.mxu0 %v431
      %469 = vmatpush.msra.mxu0 %v429
      %470 = vmatpush.msra.mxu0 %v427
      %471 = vmatpush.msra.mxu0 %v425
      %472 = vmatpush.msra.mxu0 %v423
      %473 = vmatpush.msra.mxu0 %v421
      %474 = vmatpush.msra.mxu0 %v419
      %475 = vmatpush.msra.mxu0 %v417
      %476 = vmatpush.msra.mxu0 %v415
      %477 = vmatpush.msra.mxu0 %v413
      %478 = vmatpush.msra.mxu0 %v411
      %479 = vmatpush.msra.mxu0 %v409
      %480 = vmatpush.msra.mxu0 %v407
      %481 = vmatpush.msra.mxu0 %v405
      %482 = vmatmul.f32.gmra.mxu0 %v370
      %v483 = vpop.f32.mrf.mxu0
      %v484 = vadd.f32 %v461, %v483
      %485 = vmatmul.f32.gmra.mxu0 %v372
      %v486 = vpop.f32.mrf.mxu0
      %v487 = vadd.f32 %v464, %v486
      %488 = vdwg.mxu0
      %489 = vmatpush.msra.mxu0 %v404
      %490 = vmatpush.msra.mxu0 %v402
      %491 = vmatpush.msra.mxu0 %v400
      %492 = vmatpush.msra.mxu0 %v398
      %493 = vmatpush.msra.mxu0 %v396
      %494 = vmatpush.msra.mxu0 %v394
      %495 = vmatpush.msra.mxu0 %v392
      %496 = vmatpush.msra.mxu0 %v390
      %497 = vmatpush.msra.mxu0 %v388
      %498 = vmatpush.msra.mxu0 %v386
      %499 = vmatpush.msra.mxu0 %v384
      %500 = vmatpush.msra.mxu0 %v382
      %501 = vmatpush.msra.mxu0 %v380
      %502 = vmatpush.msra.mxu0 %v378
      %503 = vmatpush.msra.mxu0 %v376
      %504 = vmatpush.msra.mxu0 %v374
      %505 = vmatmul.f32.gmra.mxu0 %v369
      %v506 = vpop.f32.mrf.mxu0
      %v507 = vadd.f32 %v440, %v506
      %508 = vmatmul.f32.gmra.mxu0 %v371
      %v509 = vpop.f32.mrf.mxu0
      %v510 = vadd.f32 %v440, %v509
      %511 = vdwg.mxu0
      %512 = vmatpush.msra.mxu0 %v436
      %513 = vmatpush.msra.mxu0 %v434
      %514 = vmatpush.msra.mxu0 %v432
      %515 = vmatpush.msra.mxu0 %v430
      %516 = vmatpush.msra.mxu0 %v428
      %517 = vmatpush.msra.mxu0 %v426
      %518 = vmatpush.msra.mxu0 %v424
      %519 = vmatpush.msra.mxu0 %v422
      %520 = vmatpush.msra.mxu0 %v420
      %521 = vmatpush.msra.mxu0 %v418
      %522 = vmatpush.msra.mxu0 %v416
      %523 = vmatpush.msra.mxu0 %v414
      %524 = vmatpush.msra.mxu0 %v412
      %525 = vmatpush.msra.mxu0 %v410
      %526 = vmatpush.msra.mxu0 %v408
      %527 = vmatpush.msra.mxu0 %v406
      %528 = vmatmul.f32.gmra.mxu0 %v370
      %v529 = vpop.f32.mrf.mxu0
      %v530 = vadd.f32 %v507, %v529
      %531 = vmatmul.f32.gmra.mxu0 %v372
      %v532 = vpop.f32.mrf.mxu0
      %v533 = vadd.f32 %v510, %v532
      %534 = vdwg.mxu0
      %v535 = vtanh.pop %v484
      %v536 = vtanh.pop %v530
      %v537 = vtanh.pop %v487
      %v538 = vtanh.pop %v533
      %v539 = vld [vmem:[%s5] sm:$0xff]
      %v540 = vld [vmem:[%s5 + $0x8] sm:$0xff]
      %v541 = vld [vmem:[%s5 + $0x10] sm:$0xff]
      %v542 = vld [vmem:[%s5 + $0x18] sm:$0xff]
      %v543 = vld [vmem:[%s5 + $0x20] sm:$0xff]
      %v544 = vld [vmem:[%s5 + $0x28] sm:$0xff]
      %v545 = vld [vmem:[%s5 + $0x30] sm:$0xff]
      %v546 = vld [vmem:[%s5 + $0x38] sm:$0xff]
      %v547 = vld [vmem:[%s5 + $0x40] sm:$0xff]
      %v548 = vld [vmem:[%s5 + $0x48] sm:$0xff]
      %v549 = vld [vmem:[%s5 + $0x50] sm:$0xff]
      %v550 = vld [vmem:[%s5 + $0x58] sm:$0xff]
      %v551 = vld [vmem:[%s5 + $0x60] sm:$0xff]
      %v552 = vld [vmem:[%s5 + $0x68] sm:$0xff]
      %v553 = vld [vmem:[%s5 + $0x70] sm:$0xff]
      %v554 = vld [vmem:[%s5 + $0x78] sm:$0xff]
      %v555 = vld [vmem:[%s5 + $0x80] sm:$0xff]
      %v556 = vld [vmem:[%s5 + $0x88] sm:$0xff]
      %v557 = vld [vmem:[%s5 + $0x90] sm:$0xff]
      %v558 = vld [vmem:[%s5 + $0x98] sm:$0xff]
      %v559 = vld [vmem:[%s5 + $0xa0] sm:$0xff]
      %v560 = vld [vmem:[%s5 + $0xa8] sm:$0xff]
      %v561 = vld [vmem:[%s5 + $0xb0] sm:$0xff]
      %v562 = vld [vmem:[%s5 + $0xb8] sm:$0xff]
      %v563 = vld [vmem:[%s5 + $0xc0] sm:$0xff]
      %v564 = vld [vmem:[%s5 + $0xc8] sm:$0xff]
      %v565 = vld [vmem:[%s5 + $0xd0] sm:$0xff]
      %v566 = vld [vmem:[%s5 + $0xd8] sm:$0xff]
      %v567 = vld [vmem:[%s5 + $0xe0] sm:$0xff]
      %v568 = vld [vmem:[%s5 + $0xe8] sm:$0xff]
      %v569 = vld [vmem:[%s5 + $0xf0] sm:$0xff]
      %v570 = vld [vmem:[%s5 + $0xf8] sm:$0xff]
      %s571 = sld [smem:[#allocation2]]
      %v572 = vstv %s571
      %573 = vmatpush.msra.mxu0 %v554
      %574 = vmatpush.msra.mxu0 %v553
      %575 = vmatpush.msra.mxu0 %v552
      %576 = vmatpush.msra.mxu0 %v551
      %577 = vmatpush.msra.mxu0 %v550
      %578 = vmatpush.msra.mxu0 %v549
      %579 = vmatpush.msra.mxu0 %v548
      %580 = vmatpush.msra.mxu0 %v547
      %581 = vmatpush.msra.mxu0 %v546
      %582 = vmatpush.msra.mxu0 %v545
      %583 = vmatpush.msra.mxu0 %v544
      %584 = vmatpush.msra.mxu0 %v543
      %585 = vmatpush.msra.mxu0 %v542
      %586 = vmatpush.msra.mxu0 %v541
      %587 = vmatpush.msra.mxu0 %v540
      %588 = vmatpush.msra.mxu0 %v539
      %589 = vmatmul.f32.gmra.mxu0 %v535
      %v590 = vpop.f32.mrf.mxu0
      %v591 = vadd.f32 %v572, %v590
      %592 = vmatmul.f32.gmra.mxu0 %v537
      %v593 = vpop.f32.mrf.mxu0
      %v594 = vadd.f32 %v572, %v593
      %595 = vdwg.mxu0
      %596 = vmatpush.msra.mxu0 %v570
      %597 = vmatpush.msra.mxu0 %v569
      %598 = vmatpush.msra.mxu0 %v568
      %599 = vmatpush.msra.mxu0 %v567
      %600 = vmatpush.msra.mxu0 %v566
      %601 = vmatpush.msra.mxu0 %v565
      %602 = vmatpush.msra.mxu0 %v564
      %603 = vmatpush.msra.mxu0 %v563
      %604 = vmatpush.msra.mxu0 %v562
      %605 = vmatpush.msra.mxu0 %v561
      %606 = vmatpush.msra.mxu0 %v560
      %607 = vmatpush.msra.mxu0 %v559
      %608 = vmatpush.msra.mxu0 %v558
      %609 = vmatpush.msra.mxu0 %v557
      %610 = vmatpush.msra.mxu0 %v556
      %611 = vmatpush.msra.mxu0 %v555
      %612 = vmatmul.f32.gmra.mxu0 %v536
      %v613 = vpop.f32.mrf.mxu0
      %v614 = vadd.f32 %v591, %v613
      %615 = vmatmul.f32.gmra.mxu0 %v538
      %v616 = vpop.f32.mrf.mxu0
      %v617 = vadd.f32 %v594, %v616
      %618 = vdwg.mxu0
      %vm619 = vcmask 64512
      %620 = vst.msk [vmem:[%s281] sm:$0xff] %vm619, %v614
      %621 = vst.msk [vmem:[%s281 + $0x8] sm:$0xff] %vm619, %v617
      %s622 = smul.u32 2, %s19
      %p623 = scmp.lt.s32.totalorder %s622, 3
      %s624 = scalar_select %p623, %s622, 3
      %s625 = smul.addr %s624, 8
      %s626 = scalar_lea.vmem %s7, %s625
      // Predicated region
      $region49: #{pref_mlp_forward.1} parent=47 // pred_check
        %p627 = pneg %p189
      $region50: #{pref_mlp_forward.1} parent=47 // pred_check_branch
        %629 = sbr.rel (%p627) target = $region52
      $region51: #{pref_mlp_forward.1} parent=47 // pred_region
        %s630 = smul.u32 2, %s19
      $region52: #{pref_mlp_forward.1} parent=47 // pred_fallthru
        _
    $region48: #{pref_mlp_forward.1} parent=5 // pred_fallthru
      _
    %p631 = scmp.le.s32.totalorder 2, %s14
    // Predicated region
    $region53: #{pref_mlp_forward.1} parent=5 // pred_check
      %p632 = pneg %p631
    $region54: #{pref_mlp_forward.1} parent=5 // pred_check_branch
      %634 = sbr.rel (%p632) target = $region56
    $region55: #{pref_mlp_forward.1} parent=5 // pred_region
      %s635 = ssub.s32 %s14, 2
      // Predicated region
      $region57: #{pref_mlp_forward.1} parent=55 // pred_check
        %p636 = pneg %p195
      $region58: #{pref_mlp_forward.1} parent=55 // pred_check_branch
        %638 = sbr.rel (%p636) target = $region60
      $region59: #{pref_mlp_forward.1} parent=55 // pred_region
        %s639 = smul.u32 2, %s20
        %p640 = scmp.lt.s32.totalorder %s639, 3
        %s641 = scalar_select %p640, %s639, 3
        %s642 = smul.addr %s641, 8
        %s643 = scalar_lea.vmem %s7, %s642
      $region60: #{pref_mlp_forward.1} parent=55 // pred_fallthru
        _
    $region56: #{pref_mlp_forward.1} parent=5 // pred_fallthru
      _
  $region6: #{pref_mlp_forward.1} parent=0 // loop_footer
    %s18 = sadd.s32 1, %s14
  $region7: #{pref_mlp_forward.1} parent=0 // loop_footer_branch
    %13 = sbr.rel target = $region3
  $region8: #{pref_mlp_forward.1} parent=0 // loop_exit
    _

</llo_original>
